<compile_context>
chip_gen: v7x
topology: tpu7x:2x2x1
jax: 0.10.0
libtpu: 0.0.40
codegen_flags: <defaults>
</compile_context>

<pallas_src>
import functools

import jax
import jax.numpy as jnp
from jax.experimental import pallas as pl
from jax.experimental.pallas import tpu as pltpu


def _round_up(x, m):
    return ((x + m - 1) // m) * m


# -----------------------------------------------------------------------------
# Fused kernel: encode -> reparameterize -> decode.  Packed I/O, 4 MXU dots.
# -----------------------------------------------------------------------------
def _cvae_kernel(
    anneal_ref,                 # (1,1) f32 SMEM runtime scalar
    xin_ref,                    # (bm, pre+cond+L) f32  = [img | pose | eps]
    w_ei_ref, b_ei_ref,         # block-diag [input|conditioner]: (pre+cond, H) bf16, (1,H) f32
    w_eh_ref, b_eh_ref,         # enc[0] (mu|logvar head):        (H, 2L) bf16, (1,2L) f32
    w_d0_ref, b_d0_ref,         # dec[0]:                         (L+cond, H) bf16, (1,H) f32
    w_d1_ref, b_d1_ref,         # dec[1] (img|pose head):         (H, pre+cond) bf16, (1,pre+cond) f32
    out_ref,                    # (bm, 2L+pre+cond) f32 = [mu | logvar | img_mean | pose_mean]
    *, pre_dim, cond_dim, latent_dim,
):
    bf16, f32 = jnp.bfloat16, jnp.float32
    anneal = anneal_ref[0, 0]

    xin = xin_ref[...]                                   # (bm, pre+cond+L) f32
    xc = xin[:, : pre_dim + cond_dim]                    # [img | pose]   (static lane slice)
    c = xin[:, pre_dim : pre_dim + cond_dim]             # pose
    eps = xin[:, pre_dim + cond_dim :]                   # eps  (bm, L)

    # encode layer 0: relu(cat(input(x), conditioner(c))) via block-diagonal weight
    h = jnp.dot(xc.astype(bf16), w_ei_ref[...], preferred_element_type=f32) + b_ei_ref[...]
    h = jnp.maximum(h, 0.0)

    # encode head (identity activation): one dot -> [mu | logvar]
    enc = jnp.dot(h.astype(bf16), w_eh_ref[...], preferred_element_type=f32) + b_eh_ref[...]
    mu = enc[:, :latent_dim]
    logvar = enc[:, latent_dim:]

    # reparameterize: z = mu + (anneal * eps) * exp(0.5 * logvar)   (f32 VPU/EUP)
    z = mu + (anneal * eps) * jnp.exp(0.5 * logvar)

    # decode layer 0: relu(dec0(cat(z, c)))   (13-lane concat, one vreg)
    zc = jnp.concatenate([z, c], axis=-1).astype(bf16)
    d0 = jnp.dot(zc, w_d0_ref[...], preferred_element_type=f32) + b_d0_ref[...]
    d0 = jnp.maximum(d0, 0.0)

    # decode head: sigmoid(dec1(.)) -> [img_mean | pose_mean] in one dot
    d1 = jnp.dot(d0.astype(bf16), w_d1_ref[...], preferred_element_type=f32) + b_d1_ref[...]
    obs = jax.nn.sigmoid(d1)

    # single lane-dense store of the packed output slab
    out_ref[...] = jnp.concatenate([enc, obs], axis=-1)


# -----------------------------------------------------------------------------
# Parameters (deterministic, PyTorch-Linear-like uniform init), pre-fused into
# the 4 weight slabs the kernel consumes.  Weights bf16 (MXU), biases f32.
# -----------------------------------------------------------------------------
def _init_linear(key, in_dim, out_dim):
    kw, kb = jax.random.split(key)
    bound = 1.0 / jnp.sqrt(jnp.float32(in_dim))
    w = jax.random.uniform(kw, (in_dim, out_dim), jnp.float32, -bound, bound)
    b = jax.random.uniform(kb, (1, out_dim), jnp.float32, -bound, bound)
    return w, b


def make_cvae_params(key, input_dim, condition_dim, latent_dim=5, hidden=40):
    # pre_dim=None in the torch module -> pre_dim = input_dim, prePCA = identity.
    pre_dim = input_dim
    hh = hidden // 2
    keys = jax.random.split(key, 5)
    w_in, b_in = _init_linear(keys[0], pre_dim, hh)                   # self.input
    w_cond, b_cond = _init_linear(keys[1], condition_dim, hh)         # self.conditioner
    w_enc, b_enc = _init_linear(keys[2], hidden, 2 * latent_dim)      # self.enc[0]
    w_dec0, b_dec0 = _init_linear(keys[3], latent_dim + condition_dim, hidden)
    # bernoulli likelihood -> dec_out_factor = 1
    w_dec1, b_dec1 = _init_linear(keys[4], hidden, pre_dim + condition_dim)

    # block-diagonal fusion: cat(x, c) @ W_blockdiag == cat(x @ W_in, c @ W_cond)
    w_ei = jnp.zeros((pre_dim + condition_dim, hidden), jnp.float32)
    w_ei = w_ei.at[:pre_dim, :hh].set(w_in).at[pre_dim:, hh:].set(w_cond)
    b_ei = jnp.concatenate([b_in, b_cond], axis=1)

    bf16 = jnp.bfloat16
    return dict(
        input_dim=input_dim, condition_dim=condition_dim,
        latent_dim=latent_dim, hidden=hidden, pre_dim=pre_dim,
        w_enc_in=w_ei.astype(bf16), b_enc_in=b_ei,
        w_enc_head=w_enc.astype(bf16), b_enc_head=b_enc,
        w_dec0=w_dec0.astype(bf16), b_dec0=b_dec0,
        w_dec1=w_dec1.astype(bf16), b_dec1=b_dec1,
    )


# -----------------------------------------------------------------------------
# Wrapper: packed I/O slabs, batch-tiled grid, weights resident across steps.
# -----------------------------------------------------------------------------
def cvae_forward(params, img, pose, eps, anneal=1.0, block_batch=1024):
    B = img.shape[0]
    L = params["latent_dim"]
    pre = params["pre_dim"]
    cond = params["condition_dim"]
    hidden = params["hidden"]
    d_in = pre + cond + L
    d_out = 2 * L + pre + cond

    # packed lane-dense input slab [img | pose | eps]
    xin = jnp.concatenate(
        [img.astype(jnp.float32), pose.astype(jnp.float32), eps.astype(jnp.float32)],
        axis=1)

    # Batch tile: as large as block_batch allows (amortizes ~0.35us/grid-step),
    # multiple of 8 sublanes, but >=2 grid steps when B is large so both v7x
    # TensorCores get work.  With packed I/O a bm=1024 tile is only ~2 MB
    # double-buffered -> far under the scoped-VMEM default on every chip.
    bm = min(block_batch, max(8, _round_up(pl.cdiv(B, 2), 8)))
    grid = (pl.cdiv(B, bm),)
    # No jnp.pad copy: ragged last block -> Pallas pads OOB reads / masks OOB writes.

    def w_spec(a):  # full, grid-invariant block (stays resident across iterations)
        return pl.BlockSpec(a.shape, lambda i: (0, 0))

    in_specs = [
        pl.BlockSpec((1, 1), lambda i: (0, 0),
                     memory_space=pltpu.MemorySpace.SMEM),       # anneal (runtime scalar)
        pl.BlockSpec((bm, d_in), lambda i: (i, 0)),              # packed activations
        w_spec(params["w_enc_in"]), w_spec(params["b_enc_in"]),
        w_spec(params["w_enc_head"]), w_spec(params["b_enc_head"]),
        w_spec(params["w_dec0"]), w_spec(params["b_dec0"]),
        w_spec(params["w_dec1"]), w_spec(params["b_dec1"]),
    ]
    out_specs = pl.BlockSpec((bm, d_out), lambda i: (i, 0))
    out_shape = jax.ShapeDtypeStruct((B, d_out), jnp.float32)

    macs_per_row = ((pre + cond) * hidden + hidden * 2 * L
                    + (L + cond) * hidden + hidden * (pre + cond))
    weight_bytes = sum(
        int(params[k].size) * params[k].dtype.itemsize
        for k in ("w_enc_in", "b_enc_in", "w_enc_head", "b_enc_head",
                  "w_dec0", "b_dec0", "w_dec1", "b_dec1"))
    cost = pl.CostEstimate(
        flops=2 * B * macs_per_row,
        transcendentals=B * (L + pre + cond),        # exp + sigmoid
        bytes_accessed=4 * B * (d_in + d_out) + weight_bytes,
    )

    anneal_arr = jnp.asarray(anneal, dtype=jnp.float32).reshape(1, 1)
    kernel = functools.partial(_cvae_kernel, pre_dim=pre, cond_dim=cond, latent_dim=L)

    packed = pl.pallas_call(
        kernel,
        grid=grid,
        in_specs=in_specs,
        out_specs=out_specs,
        out_shape=out_shape,
        compiler_params=pltpu.CompilerParams(
            dimension_semantics=("parallel",)),      # megacore / v7x 2-TC sharding
        cost_estimate=cost,
    )(
        anneal_arr, xin,
        params["w_enc_in"], params["b_enc_in"],
        params["w_enc_head"], params["b_enc_head"],
        params["w_dec0"], params["b_dec0"],
        params["w_dec1"], params["b_dec1"],
    )

    mu = packed[:, :L]
    logvar = packed[:, L:2 * L]
    img_mean = packed[:, 2 * L:2 * L + pre]
    pose_mean = packed[:, 2 * L + pre:]

    img_param = {"mean": img_mean, "var": None}       # bernoulli -> var is None
    latent_param = {"mean": mu, "logvar": logvar}
    pose_param = {"mean": pose_mean, "var": None}
    pre_param = {"latent": img, "img": None}          # identity prePCA (pre_dim=None)
    return img_param, latent_param, pose_param, pre_param


# -----------------------------------------------------------------------------
# Pure-JAX reference with identical numerics (bf16 MXU operands, f32 accumulate)
# -----------------------------------------------------------------------------
def _cvae_reference(params, img, pose, eps, anneal):
    bf16, f32 = jnp.bfloat16, jnp.float32
    L, pre = params["latent_dim"], params["pre_dim"]
    xc = jnp.concatenate([img, pose], axis=1).astype(bf16)
    h = jnp.maximum(jnp.dot(xc, params["w_enc_in"], preferred_element_type=f32)
                    + params["b_enc_in"], 0.0)
    enc = (jnp.dot(h.astype(bf16), params["w_enc_head"], preferred_element_type=f32)
           + params["b_enc_head"])
    mu, logvar = enc[:, :L], enc[:, L:]
    z = mu + (anneal * eps) * jnp.exp(0.5 * logvar)
    zc = jnp.concatenate([z, pose], axis=1).astype(bf16)
    d0 = jnp.maximum(jnp.dot(zc, params["w_dec0"], preferred_element_type=f32)
                     + params["b_dec0"], 0.0)
    obs = jax.nn.sigmoid(jnp.dot(d0.astype(bf16), params["w_dec1"],
                                 preferred_element_type=f32) + params["b_dec1"])
    return mu, logvar, obs[:, :pre], obs[:, pre:]


# -----------------------------------------------------------------------------
if __name__ == "__main__":
    INPUT_DIM = 16      # img features
    CONDITION_DIM = 8   # pose features
    LATENT_DIM = 5
    HIDDEN = 40
    BATCH = 8

    root = jax.random.PRNGKey(0)
    k_params, k_img, k_pose, k_eps = jax.random.split(root, 4)

    params = make_cvae_params(k_params, INPUT_DIM, CONDITION_DIM,
                              latent_dim=LATENT_DIM, hidden=HIDDEN)

    img = jax.random.normal(k_img, (BATCH, INPUT_DIM), jnp.float32)
    pose = jax.random.normal(k_pose, (BATCH, CONDITION_DIM), jnp.float32)
    # eps plays the role of torch.randn_like(std) in reparameterize().
    eps = jax.random.normal(k_eps, (BATCH, LATENT_DIM), jnp.float32)

    anneal = 0.7  # runtime scalar (SMEM) -> no recompile when it changes
    img_param, latent_param, pose_param, pre_param = cvae_forward(
        params, img, pose, eps, anneal=anneal)

    jax.block_until_ready(img_param["mean"])
    jax.block_until_ready(latent_param["mean"])
    jax.block_until_ready(latent_param["logvar"])
    jax.block_until_ready(pose_param["mean"])

    assert img_param["mean"].shape == (BATCH, INPUT_DIM)
    assert latent_param["mean"].shape == (BATCH, LATENT_DIM)
    assert latent_param["logvar"].shape == (BATCH, LATENT_DIM)
    assert pose_param["mean"].shape == (BATCH, CONDITION_DIM)

    # sanity check vs. pure-JAX reference with matching bf16-MXU/f32-acc numerics
    r_mu, r_lv, r_img, r_pose = _cvae_reference(params, img, pose, eps, anneal)
    assert jnp.allclose(latent_param["mean"], r_mu, atol=1e-2, rtol=1e-2)
    assert jnp.allclose(latent_param["logvar"], r_lv, atol=1e-2, rtol=1e-2)
    assert jnp.allclose(img_param["mean"], r_img, atol=1e-2, rtol=1e-2)
    assert jnp.allclose(pose_param["mean"], r_pose, atol=1e-2, rtol=1e-2)

    print("KERNEL_OK")
</pallas_src>

<mosaic_0001>
module attributes {stable_mosaic.version = 11 : i64} {
  func.func @_cvae_kernel(%arg0: i32, %arg1: memref<1x1xf32, #tpu.memory_space<smem>>, %arg2: memref<8x29xf32, #tpu.memory_space<vmem>>, %arg3: memref<24x40xbf16, #tpu.memory_space<vmem>>, %arg4: memref<1x40xf32, #tpu.memory_space<vmem>>, %arg5: memref<40x10xbf16, #tpu.memory_space<vmem>>, %arg6: memref<1x10xf32, #tpu.memory_space<vmem>>, %arg7: memref<13x40xbf16, #tpu.memory_space<vmem>>, %arg8: memref<1x40xf32, #tpu.memory_space<vmem>>, %arg9: memref<40x24xbf16, #tpu.memory_space<vmem>>, %arg10: memref<1x24xf32, #tpu.memory_space<vmem>>, %arg11: memref<8x34xf32, #tpu.memory_space<vmem>>) attributes {dimension_semantics = [#tpu.dimension_semantics<parallel>], iteration_bounds = array<i64: 1>, scalar_prefetch = 0 : i64, scratch_operands = 0 : i64, tpu.core_type = #tpu.core_type<tc>, window_params = [{transform_indices = @transform_0, window_bounds = array<i64: 1, 1>}, {transform_indices = @transform_1, window_bounds = array<i64: 8, 29>}, {pipeline_mode = #tpu.pipeline_mode<synchronous>, transform_indices = @transform_2, window_bounds = array<i64: 24, 40>}, {pipeline_mode = #tpu.pipeline_mode<synchronous>, transform_indices = @transform_3, window_bounds = array<i64: 1, 40>}, {pipeline_mode = #tpu.pipeline_mode<synchronous>, transform_indices = @transform_4, window_bounds = array<i64: 40, 10>}, {pipeline_mode = #tpu.pipeline_mode<synchronous>, transform_indices = @transform_5, window_bounds = array<i64: 1, 10>}, {pipeline_mode = #tpu.pipeline_mode<synchronous>, transform_indices = @transform_6, window_bounds = array<i64: 13, 40>}, {pipeline_mode = #tpu.pipeline_mode<synchronous>, transform_indices = @transform_7, window_bounds = array<i64: 1, 40>}, {pipeline_mode = #tpu.pipeline_mode<synchronous>, transform_indices = @transform_8, window_bounds = array<i64: 40, 24>}, {pipeline_mode = #tpu.pipeline_mode<synchronous>, transform_indices = @transform_9, window_bounds = array<i64: 1, 24>}, {transform_indices = @transform_10, window_bounds = array<i64: 8, 34>}]} {
    %c0 = arith.constant 0 : index
    %c0_0 = arith.constant 0 : index
    %0 = memref.load %arg1[%c0, %c0_0] : memref<1x1xf32, #tpu.memory_space<smem>>
    %c0_1 = arith.constant 0 : index
    %c0_2 = arith.constant 0 : index
    %1 = vector.load %arg2[%c0_1, %c0_2] : memref<8x29xf32, #tpu.memory_space<vmem>>, vector<8x29xf32>
    %2 = vector.extract_strided_slice %1 {offsets = [0, 0], sizes = [8, 24], strides = [1, 1]} : vector<8x29xf32> to vector<8x24xf32>
    %3 = vector.extract_strided_slice %1 {offsets = [0, 16], sizes = [8, 8], strides = [1, 1]} : vector<8x29xf32> to vector<8x8xf32>
    %4 = vector.extract_strided_slice %1 {offsets = [0, 24], sizes = [8, 5], strides = [1, 1]} : vector<8x29xf32> to vector<8x5xf32>
    %5 = arith.truncf %2 : vector<8x24xf32> to vector<8x24xbf16>
    %c0_3 = arith.constant 0 : index
    %c0_4 = arith.constant 0 : index
    %6 = vector.load %arg3[%c0_3, %c0_4] : memref<24x40xbf16, #tpu.memory_space<vmem>>, vector<24x40xbf16>
    %cst = arith.constant dense<0.000000e+00> : vector<8x40xf32>
    %7 = tpu.matmul %5, %6, %cst {dimension_numbers = #tpu.dot_dimension_numbers<[1], [0], [0], [1], [0, 0, 1, 1], [], []>} : vector<8x24xbf16>, vector<24x40xbf16>, vector<8x40xf32> -> vector<8x40xf32>
    %c0_5 = arith.constant 0 : index
    %c0_6 = arith.constant 0 : index
    %8 = vector.load %arg4[%c0_5, %c0_6] : memref<1x40xf32, #tpu.memory_space<vmem>>, vector<1x40xf32>
    %9 = vector.broadcast %8 : vector<1x40xf32> to vector<8x40xf32>
    %10 = arith.addf %7, %9 : vector<8x40xf32>
    %cst_7 = arith.constant 0.000000e+00 : f32
    %11 = vector.broadcast %cst_7 : f32 to vector<8x40xf32>
    %12 = arith.maximumf %10, %11 : vector<8x40xf32>
    %13 = arith.truncf %12 : vector<8x40xf32> to vector<8x40xbf16>
    %c0_8 = arith.constant 0 : index
    %c0_9 = arith.constant 0 : index
    %14 = vector.load %arg5[%c0_8, %c0_9] : memref<40x10xbf16, #tpu.memory_space<vmem>>, vector<40x10xbf16>
    %cst_10 = arith.constant dense<0.000000e+00> : vector<8x10xf32>
    %15 = tpu.matmul %13, %14, %cst_10 {dimension_numbers = #tpu.dot_dimension_numbers<[1], [0], [0], [1], [0, 0, 1, 1], [], []>} : vector<8x40xbf16>, vector<40x10xbf16>, vector<8x10xf32> -> vector<8x10xf32>
    %c0_11 = arith.constant 0 : index
    %c0_12 = arith.constant 0 : index
    %16 = vector.load %arg6[%c0_11, %c0_12] : memref<1x10xf32, #tpu.memory_space<vmem>>, vector<1x10xf32>
    %17 = vector.broadcast %16 : vector<1x10xf32> to vector<8x10xf32>
    %18 = arith.addf %15, %17 : vector<8x10xf32>
    %19 = vector.extract_strided_slice %18 {offsets = [0, 0], sizes = [8, 5], strides = [1, 1]} : vector<8x10xf32> to vector<8x5xf32>
    %20 = vector.extract_strided_slice %18 {offsets = [0, 5], sizes = [8, 5], strides = [1, 1]} : vector<8x10xf32> to vector<8x5xf32>
    %21 = vector.broadcast %0 : f32 to vector<8x5xf32>
    %22 = arith.mulf %21, %4 : vector<8x5xf32>
    %cst_13 = arith.constant 5.000000e-01 : f32
    %23 = vector.broadcast %cst_13 : f32 to vector<8x5xf32>
    %24 = arith.mulf %23, %20 : vector<8x5xf32>
    %25 = math.exp %24 : vector<8x5xf32>
    %26 = arith.mulf %22, %25 : vector<8x5xf32>
    %27 = arith.addf %19, %26 : vector<8x5xf32>
    %28 = tpu.concatenate %27, %3 in 1 : vector<8x5xf32>, vector<8x8xf32> -> vector<8x13xf32>
    %29 = arith.truncf %28 : vector<8x13xf32> to vector<8x13xbf16>
    %c0_14 = arith.constant 0 : index
    %c0_15 = arith.constant 0 : index
    %30 = vector.load %arg7[%c0_14, %c0_15] : memref<13x40xbf16, #tpu.memory_space<vmem>>, vector<13x40xbf16>
    %cst_16 = arith.constant dense<0.000000e+00> : vector<8x40xf32>
    %31 = tpu.matmul %29, %30, %cst_16 {dimension_numbers = #tpu.dot_dimension_numbers<[1], [0], [0], [1], [0, 0, 1, 1], [], []>} : vector<8x13xbf16>, vector<13x40xbf16>, vector<8x40xf32> -> vector<8x40xf32>
    %c0_17 = arith.constant 0 : index
    %c0_18 = arith.constant 0 : index
    %32 = vector.load %arg8[%c0_17, %c0_18] : memref<1x40xf32, #tpu.memory_space<vmem>>, vector<1x40xf32>
    %33 = vector.broadcast %32 : vector<1x40xf32> to vector<8x40xf32>
    %34 = arith.addf %31, %33 : vector<8x40xf32>
    %cst_19 = arith.constant 0.000000e+00 : f32
    %35 = vector.broadcast %cst_19 : f32 to vector<8x40xf32>
    %36 = arith.maximumf %34, %35 : vector<8x40xf32>
    %37 = arith.truncf %36 : vector<8x40xf32> to vector<8x40xbf16>
    %c0_20 = arith.constant 0 : index
    %c0_21 = arith.constant 0 : index
    %38 = vector.load %arg9[%c0_20, %c0_21] : memref<40x24xbf16, #tpu.memory_space<vmem>>, vector<40x24xbf16>
    %cst_22 = arith.constant dense<0.000000e+00> : vector<8x24xf32>
    %39 = tpu.matmul %37, %38, %cst_22 {dimension_numbers = #tpu.dot_dimension_numbers<[1], [0], [0], [1], [0, 0, 1, 1], [], []>} : vector<8x40xbf16>, vector<40x24xbf16>, vector<8x24xf32> -> vector<8x24xf32>
    %c0_23 = arith.constant 0 : index
    %c0_24 = arith.constant 0 : index
    %40 = vector.load %arg10[%c0_23, %c0_24] : memref<1x24xf32, #tpu.memory_space<vmem>>, vector<1x24xf32>
    %41 = vector.broadcast %40 : vector<1x24xf32> to vector<8x24xf32>
    %42 = arith.addf %39, %41 : vector<8x24xf32>
    %43 = arith.negf %42 : vector<8x24xf32>
    %44 = math.exp %43 : vector<8x24xf32>
    %cst_25 = arith.constant 1.000000e+00 : f32
    %45 = vector.broadcast %cst_25 : f32 to vector<8x24xf32>
    %46 = arith.addf %45, %44 : vector<8x24xf32>
    %47 = arith.divf %45, %46 : vector<8x24xf32>
    %48 = tpu.concatenate %18, %47 in 1 : vector<8x10xf32>, vector<8x24xf32> -> vector<8x34xf32>
    %c0_26 = arith.constant 0 : index
    %c0_27 = arith.constant 0 : index
    %49 = vector.load %arg11[%c0_26, %c0_27] : memref<8x34xf32, #tpu.memory_space<vmem>>, vector<8x34xf32>
    tpu.vector_store %arg11[%c0_26, %c0_27], %48 {strides = array<i32>} : memref<8x34xf32, #tpu.memory_space<vmem>>, vector<8x34xf32>,
    return
  }
  func.func @transform_0(%arg0: i32) -> (i32, i32) {
    %c0_i32 = arith.constant 0 : i32
    %c0_i32_0 = arith.constant 0 : i32
    %c0_i32_1 = arith.constant 0 : i32
    return %c0_i32, %c0_i32_0 : i32, i32
  }
  func.func @transform_1(%arg0: i32) -> (i32, i32) {
    %c0_i32 = arith.constant 0 : i32
    %c0_i32_0 = arith.constant 0 : i32
    return %arg0, %c0_i32 : i32, i32
  }
  func.func @transform_2(%arg0: i32) -> (i32, i32) {
    %c0_i32 = arith.constant 0 : i32
    %c0_i32_0 = arith.constant 0 : i32
    %c0_i32_1 = arith.constant 0 : i32
    return %c0_i32, %c0_i32_0 : i32, i32
  }
  func.func @transform_3(%arg0: i32) -> (i32, i32) {
    %c0_i32 = arith.constant 0 : i32
    %c0_i32_0 = arith.constant 0 : i32
    %c0_i32_1 = arith.constant 0 : i32
    return %c0_i32, %c0_i32_0 : i32, i32
  }
  func.func @transform_4(%arg0: i32) -> (i32, i32) {
    %c0_i32 = arith.constant 0 : i32
    %c0_i32_0 = arith.constant 0 : i32
    %c0_i32_1 = arith.constant 0 : i32
    return %c0_i32, %c0_i32_0 : i32, i32
  }
  func.func @transform_5(%arg0: i32) -> (i32, i32) {
    %c0_i32 = arith.constant 0 : i32
    %c0_i32_0 = arith.constant 0 : i32
    %c0_i32_1 = arith.constant 0 : i32
    return %c0_i32, %c0_i32_0 : i32, i32
  }
  func.func @transform_6(%arg0: i32) -> (i32, i32) {
    %c0_i32 = arith.constant 0 : i32
    %c0_i32_0 = arith.constant 0 : i32
    %c0_i32_1 = arith.constant 0 : i32
    return %c0_i32, %c0_i32_0 : i32, i32
  }
  func.func @transform_7(%arg0: i32) -> (i32, i32) {
    %c0_i32 = arith.constant 0 : i32
    %c0_i32_0 = arith.constant 0 : i32
    %c0_i32_1 = arith.constant 0 : i32
    return %c0_i32, %c0_i32_0 : i32, i32
  }
  func.func @transform_8(%arg0: i32) -> (i32, i32) {
    %c0_i32 = arith.constant 0 : i32
    %c0_i32_0 = arith.constant 0 : i32
    %c0_i32_1 = arith.constant 0 : i32
    return %c0_i32, %c0_i32_0 : i32, i32
  }
  func.func @transform_9(%arg0: i32) -> (i32, i32) {
    %c0_i32 = arith.constant 0 : i32
    %c0_i32_0 = arith.constant 0 : i32
    %c0_i32_1 = arith.constant 0 : i32
    return %c0_i32, %c0_i32_0 : i32, i32
  }
  func.func @transform_10(%arg0: i32) -> (i32, i32) {
    %c0_i32 = arith.constant 0 : i32
    %c0_i32_0 = arith.constant 0 : i32
    return %arg0, %c0_i32 : i32, i32
  }
}

</mosaic_0001>

<llo_original>
// kernel: tpu_custom_call.1
$region0: #{tpu_custom_call.1}
  #allocation0 [shape = 'u32[]', space=smem, size = 0x4, offset = 0x4, fixed_abs, tag = 'smem constant byte address 0x4 - core index']
  #allocation1 [shape = 'u32[144,128]{1,0:T(1,128)}', space=vmem, size = 0x12000, scoped, tag = 'internal scratch']
  #allocation2 [shape = 'f32[1,1]{1,0:T(1,128)S(6)}', space=smem, size = 0x200, scoped, tag = 'scoped memory for tpu_custom_call.1']
  %s0 = inlined_call_operand.<no memory space> [shape: f32[1,1], index: 0, kind: input, shape index: {}]
  %s1 = inlined_call_operand.vmem [shape: f32[8,29], index: 1, kind: input, shape index: {}]
  %s2 = inlined_call_operand.vmem [shape: bf16[24,40], index: 2, kind: input, shape index: {}]
  %s3 = inlined_call_operand.vmem [shape: f32[1,40], index: 3, kind: input, shape index: {}]
  %s4 = inlined_call_operand.vmem [shape: bf16[40,10], index: 4, kind: input, shape index: {}]
  %s5 = inlined_call_operand.vmem [shape: f32[1,10], index: 5, kind: input, shape index: {}]
  %s6 = inlined_call_operand.vmem [shape: bf16[13,40], index: 6, kind: input, shape index: {}]
  %s7 = inlined_call_operand.vmem [shape: f32[1,40], index: 7, kind: input, shape index: {}]
  %s8 = inlined_call_operand.vmem [shape: bf16[40,24], index: 8, kind: input, shape index: {}]
  %s9 = inlined_call_operand.vmem [shape: f32[1,24], index: 9, kind: input, shape index: {}]
  %s10 = inlined_call_operand.hbm [shape: f32[8,34], index: 10, kind: output, shape index: {}]
  %s11 = sld [smem:[#allocation0]]
  $region50: #{tpu_custom_call.1} parent=0
    _
  %s13 = ssub.s32 1, %s11
  %s14 = scalar_select 0, %s13, %s11
  %15 = sst [smem:[#allocation2]] %s0
  $region1: #{tpu_custom_call.1} parent=0
    #allocation3 [shape = 'u8[4096]{0}', space=vmem, size = 0x1000, scoped, tag = 'output window, operand 0, single buffered']
    #allocation4 [shape = 's32[1]{0}', space=sflag, size = 0x4, scoped, tag = 'scoped memory for tpu_custom_call.1']
    %16 = vsyncpa [#allocation4], 0
    // Predicated region
    $region2: #{tpu_custom_call.1} parent=1 // pred_check
      _
    $region3: #{tpu_custom_call.1} parent=1 // pred_check_branch
      %18 = sbr.rel (0) target = $region5
    $region4: #{tpu_custom_call.1} parent=1 // pred_region
      _
    $region5: #{tpu_custom_call.1} parent=1 // pred_fallthru
      _
    // Predicated region
    $region6: #{tpu_custom_call.1} parent=1 // pred_check
      _
    $region7: #{tpu_custom_call.1} parent=1 // pred_check_branch
      %20 = sbr.rel (0) target = $region9
    $region8: #{tpu_custom_call.1} parent=1 // pred_region
      _
    $region9: #{tpu_custom_call.1} parent=1 // pred_fallthru
      _
    // Predicated region
    $region10: #{tpu_custom_call.1} parent=1 // pred_check
      _
    $region11: #{tpu_custom_call.1} parent=1 // pred_check_branch
      %22 = sbr.rel (0) target = $region13
    $region12: #{tpu_custom_call.1} parent=1 // pred_region
      _
    $region13: #{tpu_custom_call.1} parent=1 // pred_fallthru
      _
    // Predicated region
    $region14: #{tpu_custom_call.1} parent=1 // pred_check
      _
    $region15: #{tpu_custom_call.1} parent=1 // pred_check_branch
      %24 = sbr.rel (0) target = $region17
    $region16: #{tpu_custom_call.1} parent=1 // pred_region
      _
    $region17: #{tpu_custom_call.1} parent=1 // pred_fallthru
      _
    // Predicated region
    $region18: #{tpu_custom_call.1} parent=1 // pred_check
      _
    $region19: #{tpu_custom_call.1} parent=1 // pred_check_branch
      %26 = sbr.rel (0) target = $region21
    $region20: #{tpu_custom_call.1} parent=1 // pred_region
      _
    $region21: #{tpu_custom_call.1} parent=1 // pred_fallthru
      _
    // Predicated region
    $region22: #{tpu_custom_call.1} parent=1 // pred_check
      _
    $region23: #{tpu_custom_call.1} parent=1 // pred_check_branch
      %28 = sbr.rel (0) target = $region25
    $region24: #{tpu_custom_call.1} parent=1 // pred_region
      _
    $region25: #{tpu_custom_call.1} parent=1 // pred_fallthru
      _
    // Predicated region
    $region26: #{tpu_custom_call.1} parent=1 // pred_check
      _
    $region27: #{tpu_custom_call.1} parent=1 // pred_check_branch
      %30 = sbr.rel (0) target = $region29
    $region28: #{tpu_custom_call.1} parent=1 // pred_region
      _
    $region29: #{tpu_custom_call.1} parent=1 // pred_fallthru
      _
    // Predicated region
    $region30: #{tpu_custom_call.1} parent=1 // pred_check
      _
    $region31: #{tpu_custom_call.1} parent=1 // pred_check_branch
      %32 = sbr.rel (0) target = $region33
    $region32: #{tpu_custom_call.1} parent=1 // pred_region
      _
    $region33: #{tpu_custom_call.1} parent=1 // pred_fallthru
      _
    // Predicated region
    $region34: #{tpu_custom_call.1} parent=1 // pred_check
      _
    $region35: #{tpu_custom_call.1} parent=1 // pred_check_branch
      %34 = sbr.rel (0) target = $region37
    $region36: #{tpu_custom_call.1} parent=1 // pred_region
      _
    $region37: #{tpu_custom_call.1} parent=1 // pred_fallthru
      _
    // Predicated region
    $region38: #{tpu_custom_call.1} parent=1 // pred_check
      _
    $region39: #{tpu_custom_call.1} parent=1 // pred_check_branch
      %36 = sbr.rel (0) target = $region41
    $region40: #{tpu_custom_call.1} parent=1 // pred_region
      _
    $region41: #{tpu_custom_call.1} parent=1 // pred_fallthru
      _
    %s38 = sld [smem:[#allocation2]]
    %v39 = vld [vmem:[%s1] sm:$0xff]
    %v40 = vpack.c.bf16 %v39, %v39
    %v41 = vld [vmem:[%s2] sm:$0xf]
    %v42 = vld [vmem:[%s2 + $0x4] sm:$0xf]
    %v43 = vld [vmem:[%s2 + $0x8] sm:$0xf]
    %v44 = vld [vmem:[%s3] sm:$0x1]
    %v46 = vlaneseq
    %v47 = vshrl.u32 %v46, 7
    %v48 = vsub.s32 0, %v47
    %v49 = vrot.slane %v44, %v48
    %v54 = vunpack.c.l.b16 %v41
    %v55 = vunpack.c.l.b16 %v42
    %v56 = vunpack.c.l.b16 %v43
    %v57 = vpack.c.b16 %v55, %v54
    %v58 = vpack.c.b16 %v56, %v56
    %vm60 = vcmask 195584
    %v62 = vsel %vm60, %v40, 0
    %vm64 = vcmask 1043456
    %v66 = vsel %vm64, %v58, 0
    %68 = vmatprep.subr.bf16.mxu0 0
    %69 = vmatpush1.bf16.msra.mxu0 %v57
    %70 = vmatprep.subr.bf16.mxu0 0
    %71 = vmatpush1.bf16.msra.mxu0 %v66
    %72 = vmatprep.subr.bf16.mxu0 0
    %73 = vmatpush1.bf16.msra.mxu0 0
    %74 = vmatprep.subr.bf16.mxu0 0
    %75 = vmatpush1.bf16.msra.mxu0 0
    %76 = vmatprep.subr.bf16.mxu0 0
    %77 = vmatpush1.bf16.msra.mxu0 0
    %78 = vmatprep.subr.bf16.mxu0 0
    %79 = vmatpush1.bf16.msra.mxu0 0
    %80 = vmatprep.subr.bf16.mxu0 0
    %81 = vmatpush1.bf16.msra.mxu0 0
    %82 = vmatprep.subr.bf16.mxu0 0
    %83 = vmatpush1.bf16.msra.mxu0 0
    %84 = vmatprep.subr.bf16.mxu0 0
    %85 = vmatpush1.bf16.msra.mxu0 0
    %86 = vmatprep.subr.bf16.mxu0 0
    %87 = vmatpush1.bf16.msra.mxu0 0
    %88 = vmatprep.subr.bf16.mxu0 0
    %89 = vmatpush1.bf16.msra.mxu0 0
    %90 = vmatprep.subr.bf16.mxu0 0
    %91 = vmatpush1.bf16.msra.mxu0 0
    %92 = vmatprep.subr.bf16.mxu0 0
    %93 = vmatpush1.bf16.msra.mxu0 0
    %94 = vmatprep.subr.bf16.mxu0 0
    %95 = vmatpush1.bf16.msra.mxu0 0
    %96 = vmatprep.subr.bf16.mxu0 0
    %97 = vmatpush1.bf16.msra.mxu0 0
    %98 = vmatprep.subr.bf16.mxu0 0
    %99 = vmatpush1.bf16.msra.mxu0 0
    %100 = vmatprep.mubr.bf16.mxu0 0
    %101 = vmatmul.mubr.bf16.gmra.mrb[0].mxu0 %v62
    %v102 = vpop.f32.mrb[0].mxu0
    %v103 = vadd.f32 %v49, %v102
    %v104 = vpop.f32.mrb[0].mxu0
    %v105 = vpop.f32.mrb[0].mxu0
    %v106 = vpop.f32.mrb[0].mxu0
    %107 = vdwg.mxu0
    %v108 = vmax.f32 %v103, 0.0
    %v109 = vpack.c.bf16 %v108, %v108
    %v110 = vld [vmem:[%s4] sm:$0xf]
    %v111 = vld [vmem:[%s4 + $0x4] sm:$0xf]
    %v112 = vld [vmem:[%s4 + $0x8] sm:$0xf]
    %v113 = vld [vmem:[%s4 + $0xc] sm:$0xf]
    %v114 = vld [vmem:[%s4 + $0x10] sm:$0xf]
    %v115 = vld [vmem:[%s5] sm:$0x1]
    %v117 = vlaneseq
    %v118 = vshrl.u32 %v117, 7
    %v119 = vsub.s32 0, %v118
    %v120 = vrot.slane %v115, %v119
    %v127 = vunpack.c.l.b16 %v110
    %v128 = vunpack.c.l.b16 %v111
    %v129 = vunpack.c.l.b16 %v112
    %v130 = vunpack.c.l.b16 %v113
    %v131 = vunpack.c.l.b16 %v114
    %v132 = vpack.c.b16 %v128, %v127
    %v133 = vpack.c.b16 %v130, %v129
    %v134 = vpack.c.b16 %v131, %v131
    %vm137 = vcmask 326656
    %v139 = vsel %vm137, %v109, 0
    %v142 = vsel %vm64, %v134, 0
    %144 = vmatprep.subr.bf16.mxu0 0
    %145 = vmatpush1.bf16.msra.mxu0 %v132
    %146 = vmatprep.subr.bf16.mxu0 0
    %147 = vmatpush1.bf16.msra.mxu0 %v133
    %148 = vmatprep.subr.bf16.mxu0 0
    %149 = vmatpush1.bf16.msra.mxu0 %v142
    %150 = vmatprep.subr.bf16.mxu0 0
    %151 = vmatpush1.bf16.msra.mxu0 0
    %152 = vmatprep.subr.bf16.mxu0 0
    %153 = vmatpush1.bf16.msra.mxu0 0
    %154 = vmatprep.subr.bf16.mxu0 0
    %155 = vmatpush1.bf16.msra.mxu0 0
    %156 = vmatprep.subr.bf16.mxu0 0
    %157 = vmatpush1.bf16.msra.mxu0 0
    %158 = vmatprep.subr.bf16.mxu0 0
    %159 = vmatpush1.bf16.msra.mxu0 0
    %160 = vmatprep.subr.bf16.mxu0 0
    %161 = vmatpush1.bf16.msra.mxu0 0
    %162 = vmatprep.subr.bf16.mxu0 0
    %163 = vmatpush1.bf16.msra.mxu0 0
    %164 = vmatprep.subr.bf16.mxu0 0
    %165 = vmatpush1.bf16.msra.mxu0 0
    %166 = vmatprep.subr.bf16.mxu0 0
    %167 = vmatpush1.bf16.msra.mxu0 0
    %168 = vmatprep.subr.bf16.mxu0 0
    %169 = vmatpush1.bf16.msra.mxu0 0
    %170 = vmatprep.subr.bf16.mxu0 0
    %171 = vmatpush1.bf16.msra.mxu0 0
    %172 = vmatprep.subr.bf16.mxu0 0
    %173 = vmatpush1.bf16.msra.mxu0 0
    %174 = vmatprep.subr.bf16.mxu0 0
    %175 = vmatpush1.bf16.msra.mxu0 0
    %176 = vmatprep.mubr.bf16.mxu0 0
    %177 = vmatmul.mubr.bf16.gmra.mrb[0].mxu0 %v139
    %v178 = vpop.f32.mrb[0].mxu0
    %v179 = vadd.f32 %v120, %v178
    %v180 = vpop.f32.mrb[0].mxu0
    %v181 = vpop.f32.mrb[0].mxu0
    %v182 = vpop.f32.mrb[0].mxu0
    %183 = vdwg.mxu0
    %v184 = vstv %s38
    %v185 = vmul.f32 %v184, %v39
    %v186 = vmul.f32 %v179, 0.5
    %v187 = vmul.f32 %v186, 1.442695
    %v188 = vpow.pop %v187
    %190 = vrot.lane.b32.xlu0 %v188, 19
    %v191 = vpop.permute.xlu0 %190
    %v193 = vmul.f32 %v185, %v191
    %195 = vrot.lane.b32.xlu0 %v193, 104
    %v196 = vpop.permute.xlu0 %195
    %v198 = vadd.f32 %v179, %v196
    %200 = vrot.lane.b32.xlu0 %v39, 117
    %v201 = vpop.permute.xlu0 %200
    %vm203 = vcmask 39936
    %v204 = vsel %vm203, %v198, %v201
    %v205 = vpack.c.bf16 %v204, %v204
    %v206 = vld [vmem:[%s6] sm:$0xf]
    %v207 = vld [vmem:[%s6 + $0x4] sm:$0x7]
    %v208 = vld [vmem:[%s7] sm:$0x1]
    %v210 = vlaneseq
    %v211 = vshrl.u32 %v210, 7
    %v212 = vsub.s32 0, %v211
    %v213 = vrot.slane %v208, %v212
    %v217 = vunpack.c.l.b16 %v206
    %v218 = vunpack.c.l.b16 %v207
    %v219 = vpack.c.b16 %v218, %v217
    %vm220 = vcmask 105472
    %v222 = vsel %vm220, %v205, 0
    %vm224 = vcmask 1045504
    %vm225 = vcmask 1046528
    %v226 = vsel %vm224, 4294967295, 65535
    %v227 = vsel %vm225, %v226, 0
    %v229 = vand.u32 %v219, %v227
    %231 = vmatprep.subr.bf16.mxu0 0
    %232 = vmatpush1.bf16.msra.mxu0 %v229
    %233 = vmatprep.subr.bf16.mxu0 0
    %234 = vmatpush1.bf16.msra.mxu0 0
    %235 = vmatprep.subr.bf16.mxu0 0
    %236 = vmatpush1.bf16.msra.mxu0 0
    %237 = vmatprep.subr.bf16.mxu0 0
    %238 = vmatpush1.bf16.msra.mxu0 0
    %239 = vmatprep.subr.bf16.mxu0 0
    %240 = vmatpush1.bf16.msra.mxu0 0
    %241 = vmatprep.subr.bf16.mxu0 0
    %242 = vmatpush1.bf16.msra.mxu0 0
    %243 = vmatprep.subr.bf16.mxu0 0
    %244 = vmatpush1.bf16.msra.mxu0 0
    %245 = vmatprep.subr.bf16.mxu0 0
    %246 = vmatpush1.bf16.msra.mxu0 0
    %247 = vmatprep.subr.bf16.mxu0 0
    %248 = vmatpush1.bf16.msra.mxu0 0
    %249 = vmatprep.subr.bf16.mxu0 0
    %250 = vmatpush1.bf16.msra.mxu0 0
    %251 = vmatprep.subr.bf16.mxu0 0
    %252 = vmatpush1.bf16.msra.mxu0 0
    %253 = vmatprep.subr.bf16.mxu0 0
    %254 = vmatpush1.bf16.msra.mxu0 0
    %255 = vmatprep.subr.bf16.mxu0 0
    %256 = vmatpush1.bf16.msra.mxu0 0
    %257 = vmatprep.subr.bf16.mxu0 0
    %258 = vmatpush1.bf16.msra.mxu0 0
    %259 = vmatprep.subr.bf16.mxu0 0
    %260 = vmatpush1.bf16.msra.mxu0 0
    %261 = vmatprep.subr.bf16.mxu0 0
    %262 = vmatpush1.bf16.msra.mxu0 0
    %263 = vmatprep.mubr.bf16.mxu0 0
    %264 = vmatmul.mubr.bf16.gmra.mrb[0].mxu0 %v222
    %v265 = vpop.f32.mrb[0].mxu0
    %v266 = vadd.f32 %v213, %v265
    %v267 = vpop.f32.mrb[0].mxu0
    %v268 = vpop.f32.mrb[0].mxu0
    %v269 = vpop.f32.mrb[0].mxu0
    %270 = vdwg.mxu0
    %v271 = vmax.f32 %v266, 0.0
    %v272 = vpack.c.bf16 %v271, %v271
    %v273 = vld [vmem:[%s8] sm:$0xf]
    %v274 = vld [vmem:[%s8 + $0x4] sm:$0xf]
    %v275 = vld [vmem:[%s8 + $0x8] sm:$0xf]
    %v276 = vld [vmem:[%s8 + $0xc] sm:$0xf]
    %v277 = vld [vmem:[%s8 + $0x10] sm:$0xf]
    %v278 = vld [vmem:[%s9] sm:$0x1]
    %v280 = vlaneseq
    %v281 = vshrl.u32 %v280, 7
    %v282 = vsub.s32 0, %v281
    %v283 = vrot.slane %v278, %v282
    %v290 = vunpack.c.l.b16 %v273
    %v291 = vunpack.c.l.b16 %v274
    %v292 = vunpack.c.l.b16 %v275
    %v293 = vunpack.c.l.b16 %v276
    %v294 = vunpack.c.l.b16 %v277
    %v295 = vpack.c.b16 %v291, %v290
    %v296 = vpack.c.b16 %v293, %v292
    %v297 = vpack.c.b16 %v294, %v294
    %v301 = vsel %vm137, %v272, 0
    %v304 = vsel %vm64, %v297, 0
    %306 = vmatprep.subr.bf16.mxu0 0
    %307 = vmatpush1.bf16.msra.mxu0 %v295
    %308 = vmatprep.subr.bf16.mxu0 0
    %309 = vmatpush1.bf16.msra.mxu0 %v296
    %310 = vmatprep.subr.bf16.mxu0 0
    %311 = vmatpush1.bf16.msra.mxu0 %v304
    %312 = vmatprep.subr.bf16.mxu0 0
    %313 = vmatpush1.bf16.msra.mxu0 0
    %314 = vmatprep.subr.bf16.mxu0 0
    %315 = vmatpush1.bf16.msra.mxu0 0
    %316 = vmatprep.subr.bf16.mxu0 0
    %317 = vmatpush1.bf16.msra.mxu0 0
    %318 = vmatprep.subr.bf16.mxu0 0
    %319 = vmatpush1.bf16.msra.mxu0 0
    %320 = vmatprep.subr.bf16.mxu0 0
    %321 = vmatpush1.bf16.msra.mxu0 0
    %322 = vmatprep.subr.bf16.mxu0 0
    %323 = vmatpush1.bf16.msra.mxu0 0
    %324 = vmatprep.subr.bf16.mxu0 0
    %325 = vmatpush1.bf16.msra.mxu0 0
    %326 = vmatprep.subr.bf16.mxu0 0
    %327 = vmatpush1.bf16.msra.mxu0 0
    %328 = vmatprep.subr.bf16.mxu0 0
    %329 = vmatpush1.bf16.msra.mxu0 0
    %330 = vmatprep.subr.bf16.mxu0 0
    %331 = vmatpush1.bf16.msra.mxu0 0
    %332 = vmatprep.subr.bf16.mxu0 0
    %333 = vmatpush1.bf16.msra.mxu0 0
    %334 = vmatprep.subr.bf16.mxu0 0
    %335 = vmatpush1.bf16.msra.mxu0 0
    %336 = vmatprep.subr.bf16.mxu0 0
    %337 = vmatpush1.bf16.msra.mxu0 0
    %338 = vmatprep.mubr.bf16.mxu0 0
    %339 = vmatmul.mubr.bf16.gmra.mrb[0].mxu0 %v301
    %v340 = vpop.f32.mrb[0].mxu0
    %v341 = vadd.f32 %v283, %v340
    %v342 = vpop.f32.mrb[0].mxu0
    %v343 = vpop.f32.mrb[0].mxu0
    %v344 = vpop.f32.mrb[0].mxu0
    %345 = vdwg.mxu0
    %v346 = vxor.u32 %v341, 2147483648
    %v347 = vmul.f32 %v346, 1.442695
    %v348 = vpow.pop %v347
    %v349 = vadd.f32 %v348, 1.0
    %v350 = vrcp.pop %v349
    %v351 = vmul.f32 1.0, %v350
    %353 = vrot.lane.b32.xlu0 %v351, 10
    %v354 = vpop.permute.xlu0 %353
    %vm356 = vcmask 80896
    %v357 = vsel %vm356, %v179, %v354
    %vm358 = vcmask 277504
    %359 = vst.msk [vmem:[#allocation3] sm:$0xff] %vm358, %v357
    // Predicated region
    $region42: #{tpu_custom_call.1} parent=1 // pred_check
      _
    $region43: #{tpu_custom_call.1} parent=1 // pred_check_branch
      %361 = sbr.rel (0) target = $region45
    $region44: #{tpu_custom_call.1} parent=1 // pred_region
      %s363 = ssub.s32 128, 128
      %364 = vsyncadd [#allocation4], %s363
      %s366 = sshll.u32 [#allocation3], 4
      %s367 = int_to_ptr.vmem [resolvable:$true] %s366
      %369 = dma.vmem_to_hbm [thread:$0]  %s367, 128, %s10, [#allocation4]
    $region45: #{tpu_custom_call.1} parent=1 // pred_fallthru
      _
    // Predicated region
    $region46: #{tpu_custom_call.1} parent=1 // pred_check
      _
    $region47: #{tpu_custom_call.1} parent=1 // pred_check_branch
      %371 = sbr.rel (0) target = $region49
    $region48: #{tpu_custom_call.1} parent=1 // pred_region
      %372 = dma.done [#allocation4], 128
    $region49: #{tpu_custom_call.1} parent=1 // pred_fallthru
      _
    %373 = vsyncpa [#allocation4], 1

</llo_original>
